<compile_context>
chip_gen: v6e
topology: v6e:2x2x1
jax: 0.10.0
libtpu: 0.0.40
codegen_flags: <defaults>
</compile_context>

<pallas_src>
import functools

import jax
import jax.numpy as jnp
from jax.experimental import pallas as pl
from jax.experimental.pallas import tpu as pltpu


def _round_up(x, m):
    return (x + m - 1) // m * m


def _kernel_model_kernel(c_ref, xT_ref, csq_ref, xsq_ref, wT_ref, o_ref, *, gamma):
    """One (sample-tile i, center-tile j) step, transposed layout.

    c_ref  : (tm, D)   center tile (f32)
    xT_ref : (D, tn)   transposed sample tile (f32)
    csq_ref: (tm, 1)   precomputed ||c||^2
    xsq_ref: (1, tn)   precomputed ||x||^2
    wT_ref : (Y, tm)   transposed weight tile (bf16)
    o_ref  : (Y, tn)   transposed output tile (f32), resident across j (reduction axis)
    """
    j = pl.program_id(1)

    @pl.when(j == 0)
    def _():
        o_ref[...] = jnp.zeros_like(o_ref)

    # Pairwise squared distances (transposed): d2[m, n] = ||c_m||^2 + ||x_n||^2 - 2 c_m.x_n
    # Cross term on the MXU in f32 for distance accuracy.
    cx = jnp.dot(c_ref[...], xT_ref[...], preferred_element_type=jnp.float32)  # (tm, tn)
    d2 = jnp.maximum(csq_ref[...] + xsq_ref[...] - 2.0 * cx, 0.0)

    # Gaussian kernel block (f32 exp keeps v5e-compatible precision path).
    kmat = jnp.exp(-gamma * d2)                                                # (tm, tn)

    # Partial (kmat @ weight)^T contribution: (Y, tm) @ (tm, tn) -> (Y, tn), bf16 MXU,
    # f32 accumulation directly into the resident output block.
    o_ref[...] += jnp.dot(
        wT_ref[...], kmat.astype(jnp.bfloat16), preferred_element_type=jnp.float32
    )


def kernel_model_forward(samples, centers, weight, *, bandwidth=5.0, tn=256, tm=256):
    """pred = exp(-||samples - centers||^2 / (2*bandwidth^2)) @ weight"""
    N, D = samples.shape
    M, D2 = centers.shape
    assert D == D2
    M2, Y = weight.shape
    assert M == M2

    samples = samples.astype(jnp.float32)
    centers = centers.astype(jnp.float32)
    weight = weight.astype(jnp.float32)

    # Lane dims (tn, tm) must be multiples of 128; shrink for tiny inputs, pad to tiles.
    tn = max(128, min(tn, _round_up(N, 128)))
    tm = max(128, min(tm, _round_up(M, 128)))
    N_pad = _round_up(N, tn)
    M_pad = _round_up(M, tm)

    # Zero padding: padded centers pair with zero weight rows -> contribute exactly 0;
    # padded sample rows produce garbage columns that are sliced off below.
    if N_pad != N:
        samples = jnp.pad(samples, ((0, N_pad - N), (0, 0)))
    if M_pad != M:
        centers = jnp.pad(centers, ((0, M_pad - M), (0, 0)))
        weight = jnp.pad(weight, ((0, M_pad - M), (0, 0)))

    # Hoist layout / norm work out of the kernel (one-time XLA ops).
    samples_T = samples.T                                        # (D, N_pad)
    weight_T = weight.T.astype(jnp.bfloat16)                     # (Y, M_pad)
    x_sq = jnp.sum(samples * samples, axis=-1)[None, :]          # (1, N_pad)
    c_sq = jnp.sum(centers * centers, axis=-1, keepdims=True)    # (M_pad, 1)

    gamma = 1.0 / (2.0 * float(bandwidth) * float(bandwidth))
    kernel = functools.partial(_kernel_model_kernel, gamma=gamma)

    grid = (N_pad // tn, M_pad // tm)

    flops = 2 * N_pad * M_pad * D + 2 * N_pad * M_pad * Y + 5 * N_pad * M_pad
    bytes_accessed = (
        4 * (M_pad * D + D * N_pad + M_pad + N_pad + Y * N_pad) + 2 * Y * M_pad
    )

    out_T = pl.pallas_call(
        kernel,
        out_shape=jax.ShapeDtypeStruct((Y, N_pad), jnp.float32),
        grid_spec=pltpu.PrefetchScalarGridSpec(
            num_scalar_prefetch=0,
            grid=grid,
            in_specs=[
                pl.BlockSpec((tm, D), lambda i, j: (j, 0)),   # centers
                pl.BlockSpec((D, tn), lambda i, j: (0, i)),   # samples^T
                pl.BlockSpec((tm, 1), lambda i, j: (j, 0)),   # ||c||^2
                pl.BlockSpec((1, tn), lambda i, j: (0, i)),   # ||x||^2
                pl.BlockSpec((Y, tm), lambda i, j: (0, j)),   # weight^T (bf16)
            ],
            out_specs=pl.BlockSpec((Y, tn), lambda i, j: (0, i)),
        ),
        compiler_params=pltpu.CompilerParams(
            dimension_semantics=("parallel", "arbitrary"),
            vmem_limit_bytes=48 * 1024 * 1024,  # safe on v7x (64 MiB physical VMEM)
        ),
        cost_estimate=pl.CostEstimate(
            flops=int(flops),
            transcendentals=int(N_pad * M_pad),
            bytes_accessed=int(bytes_accessed),
        ),
    )(centers, samples_T, c_sq, x_sq, weight_T)

    # TODO(synk): D is kept un-tiled inside each block; for very large feature dims add a
    # D-chunked reduction to bound VMEM (not needed for typical EigenPro feature sizes).
    return out_T[:, :N].T


def _reference_forward(samples, centers, weight, bandwidth=5.0):
    d2 = (
        jnp.sum(samples * samples, axis=-1, keepdims=True)
        + jnp.sum(centers * centers, axis=-1)[None, :]
        - 2.0 * samples @ centers.T
    )
    d2 = jnp.maximum(d2, 0.0)
    kmat = jnp.exp(-d2 / (2.0 * bandwidth * bandwidth))
    return kmat @ weight


if __name__ == "__main__":
    key = jax.random.PRNGKey(0)
    k1, k2, k3 = jax.random.split(key, 3)

    # Small deterministic shapes consistent with KernelModel:
    #   centers: (n_centers, x_dim), weight: (n_centers, y_dim), samples: (batch, x_dim)
    N, D, M, Y = 16, 16, 32, 8

    samples = jax.random.normal(k1, (N, D), dtype=jnp.float32)
    centers = jax.random.normal(k2, (M, D), dtype=jnp.float32)
    # Module initializes weight to zeros; use a deterministic nonzero weight
    # (forward(samples, weight) accepts an explicit weight) for a non-trivial check.
    weight = 0.1 * jax.random.normal(k3, (M, Y), dtype=jnp.float32)

    pred = kernel_model_forward(samples, centers, weight, bandwidth=5.0)
    pred = jax.block_until_ready(pred)

    ref = _reference_forward(samples, centers, weight, bandwidth=5.0)
    assert pred.shape == (N, Y)
    # bf16 is used only for the kmat @ weight contraction (f32 accumulate), so the
    # tolerance is relaxed relative to a pure-f32 path.
    assert jnp.allclose(pred, ref, atol=1e-2, rtol=1e-2), "mismatch vs reference"

    print("KERNEL_OK")
</pallas_src>

<mosaic_0001>
module attributes {stable_mosaic.version = 11 : i64} {
  func.func @_kernel_model_kernel(%arg0: i32, %arg1: i32, %arg2: memref<128x16xf32, #tpu.memory_space<vmem>>, %arg3: memref<16x128xf32, #tpu.memory_space<vmem>>, %arg4: memref<128x1xf32, #tpu.memory_space<vmem>>, %arg5: memref<1x128xf32, #tpu.memory_space<vmem>>, %arg6: memref<8x128xbf16, #tpu.memory_space<vmem>>, %arg7: memref<8x128xf32, #tpu.memory_space<vmem>>) attributes {dimension_semantics = [#tpu.dimension_semantics<parallel>, #tpu.dimension_semantics<arbitrary>], iteration_bounds = array<i64: 1, 1>, scalar_prefetch = 0 : i64, scratch_operands = 0 : i64, tpu.core_type = #tpu.core_type<tc>, window_params = [{transform_indices = @transform_0, window_bounds = array<i64: 128, 16>}, {transform_indices = @transform_1, window_bounds = array<i64: 16, 128>}, {transform_indices = @transform_2, window_bounds = array<i64: 128, 1>}, {transform_indices = @transform_3, window_bounds = array<i64: 1, 128>}, {transform_indices = @transform_4, window_bounds = array<i64: 8, 128>}, {transform_indices = @transform_5, window_bounds = array<i64: 8, 128>}]} {
    %c0_i32 = arith.constant 0 : i32
    %0 = arith.cmpi eq, %arg1, %c0_i32 : i32
    %1 = arith.extui %0 : i1 to i32
    %c0_i32_0 = arith.constant 0 : i32
    %2 = arith.cmpi ne, %1, %c0_i32_0 : i32
    scf.if %2 {
      %cst_18 = arith.constant 0.000000e+00 : f32
      %25 = vector.broadcast %cst_18 : f32 to vector<8x128xf32>
      %c0_19 = arith.constant 0 : index
      %c0_20 = arith.constant 0 : index
      %26 = vector.load %arg7[%c0_19, %c0_20] : memref<8x128xf32, #tpu.memory_space<vmem>>, vector<8x128xf32>
      tpu.vector_store %arg7[%c0_19, %c0_20], %25 {strides = array<i32>} : memref<8x128xf32, #tpu.memory_space<vmem>>, vector<8x128xf32>,
    } else {
    }
    %c0 = arith.constant 0 : index
    %c0_1 = arith.constant 0 : index
    %3 = vector.load %arg2[%c0, %c0_1] : memref<128x16xf32, #tpu.memory_space<vmem>>, vector<128x16xf32>
    %c0_2 = arith.constant 0 : index
    %c0_3 = arith.constant 0 : index
    %4 = vector.load %arg3[%c0_2, %c0_3] : memref<16x128xf32, #tpu.memory_space<vmem>>, vector<16x128xf32>
    %cst = arith.constant dense<0.000000e+00> : vector<128x128xf32>
    %5 = tpu.matmul %3, %4, %cst {dimension_numbers = #tpu.dot_dimension_numbers<[1], [0], [0], [1], [0, 0, 1, 1], [], []>} : vector<128x16xf32>, vector<16x128xf32>, vector<128x128xf32> -> vector<128x128xf32>
    %c0_4 = arith.constant 0 : index
    %c0_5 = arith.constant 0 : index
    %6 = vector.load %arg4[%c0_4, %c0_5] : memref<128x1xf32, #tpu.memory_space<vmem>>, vector<128x1xf32>
    %c0_6 = arith.constant 0 : index
    %c0_7 = arith.constant 0 : index
    %7 = vector.load %arg5[%c0_6, %c0_7] : memref<1x128xf32, #tpu.memory_space<vmem>>, vector<1x128xf32>
    %8 = vector.broadcast %6 : vector<128x1xf32> to vector<128x128xf32>
    %9 = vector.broadcast %7 : vector<1x128xf32> to vector<128x128xf32>
    %10 = arith.addf %8, %9 : vector<128x128xf32>
    %cst_8 = arith.constant 2.000000e+00 : f32
    %11 = vector.broadcast %cst_8 : f32 to vector<128x128xf32>
    %12 = arith.mulf %11, %5 : vector<128x128xf32>
    %13 = arith.subf %10, %12 : vector<128x128xf32>
    %cst_9 = arith.constant 0.000000e+00 : f32
    %14 = vector.broadcast %cst_9 : f32 to vector<128x128xf32>
    %15 = arith.maximumf %13, %14 : vector<128x128xf32>
    %cst_10 = arith.constant -2.000000e-02 : f32
    %16 = vector.broadcast %cst_10 : f32 to vector<128x128xf32>
    %17 = arith.mulf %16, %15 : vector<128x128xf32>
    %18 = math.exp %17 : vector<128x128xf32>
    %c0_11 = arith.constant 0 : index
    %c0_12 = arith.constant 0 : index
    %19 = vector.load %arg7[%c0_11, %c0_12] : memref<8x128xf32, #tpu.memory_space<vmem>>, vector<8x128xf32>
    %c0_13 = arith.constant 0 : index
    %c0_14 = arith.constant 0 : index
    %20 = vector.load %arg6[%c0_13, %c0_14] : memref<8x128xbf16, #tpu.memory_space<vmem>>, vector<8x128xbf16>
    %21 = arith.truncf %18 : vector<128x128xf32> to vector<128x128xbf16>
    %cst_15 = arith.constant dense<0.000000e+00> : vector<8x128xf32>
    %22 = tpu.matmul %20, %21, %cst_15 {dimension_numbers = #tpu.dot_dimension_numbers<[1], [0], [0], [1], [0, 0, 1, 1], [], []>} : vector<8x128xbf16>, vector<128x128xbf16>, vector<8x128xf32> -> vector<8x128xf32>
    %23 = arith.addf %19, %22 : vector<8x128xf32>
    %c0_16 = arith.constant 0 : index
    %c0_17 = arith.constant 0 : index
    %24 = vector.load %arg7[%c0_16, %c0_17] : memref<8x128xf32, #tpu.memory_space<vmem>>, vector<8x128xf32>
    tpu.vector_store %arg7[%c0_16, %c0_17], %23 {strides = array<i32>} : memref<8x128xf32, #tpu.memory_space<vmem>>, vector<8x128xf32>,
    return
  }
  func.func @transform_0(%arg0: i32, %arg1: i32) -> (i32, i32) {
    %c0_i32 = arith.constant 0 : i32
    %c0_i32_0 = arith.constant 0 : i32
    return %arg1, %c0_i32 : i32, i32
  }
  func.func @transform_1(%arg0: i32, %arg1: i32) -> (i32, i32) {
    %c0_i32 = arith.constant 0 : i32
    %c0_i32_0 = arith.constant 0 : i32
    return %c0_i32, %arg0 : i32, i32
  }
  func.func @transform_2(%arg0: i32, %arg1: i32) -> (i32, i32) {
    %c0_i32 = arith.constant 0 : i32
    %c0_i32_0 = arith.constant 0 : i32
    return %arg1, %c0_i32 : i32, i32
  }
  func.func @transform_3(%arg0: i32, %arg1: i32) -> (i32, i32) {
    %c0_i32 = arith.constant 0 : i32
    %c0_i32_0 = arith.constant 0 : i32
    return %c0_i32, %arg0 : i32, i32
  }
  func.func @transform_4(%arg0: i32, %arg1: i32) -> (i32, i32) {
    %c0_i32 = arith.constant 0 : i32
    %c0_i32_0 = arith.constant 0 : i32
    return %c0_i32, %arg1 : i32, i32
  }
  func.func @transform_5(%arg0: i32, %arg1: i32) -> (i32, i32) {
    %c0_i32 = arith.constant 0 : i32
    %c0_i32_0 = arith.constant 0 : i32
    return %c0_i32, %arg0 : i32, i32
  }
}

</mosaic_0001>

<llo_original>
// kernel: tpu_custom_call.1
$region0: #{tpu_custom_call.1}
  #allocation0 [shape = 'u32[]', space=smem, size = 0x4, offset = 0x4, fixed_abs, tag = 'smem constant byte address 0x4 - core index']
  #allocation1 [shape = 'u32[144,128]{1,0:T(1,128)}', space=vmem, size = 0x12000, scoped, tag = 'internal scratch']
  %s0 = inlined_call_operand.vmem [shape: f32[128,16], index: 0, kind: input, shape index: {}]
  %s1 = inlined_call_operand.vmem [shape: f32[16,128], index: 1, kind: input, shape index: {}]
  %s2 = inlined_call_operand.vmem [shape: f32[128,1], index: 2, kind: input, shape index: {}]
  %s3 = inlined_call_operand.vmem [shape: f32[1,128], index: 3, kind: input, shape index: {}]
  %s4 = inlined_call_operand.vmem [shape: bf16[8,128], index: 4, kind: input, shape index: {}]
  %s5 = inlined_call_operand.hbm [shape: f32[8,128], index: 5, kind: output, shape index: {}]
  %s6 = sld [smem:[#allocation0]]
  $region34: #{tpu_custom_call.1} parent=0
    _
  %s8 = ssub.s32 1, %s6
  %s9 = scalar_select 0, %s8, %s6
  $region1: #{tpu_custom_call.1} parent=0
    #allocation2 [shape = 'u8[4096]{0}', space=vmem, size = 0x1000, scoped, tag = 'output window, operand 0, single buffered']
    #allocation3 [shape = 's32[1]{0}', space=sflag, size = 0x4, scoped, tag = 'scoped memory for tpu_custom_call.1']
    %10 = vsyncpa [#allocation3], 0
    // Predicated region
    $region2: #{tpu_custom_call.1} parent=1 // pred_check
      _
    $region3: #{tpu_custom_call.1} parent=1 // pred_check_branch
      %12 = sbr.rel (0) target = $region5
    $region4: #{tpu_custom_call.1} parent=1 // pred_region
      _
    $region5: #{tpu_custom_call.1} parent=1 // pred_fallthru
      _
    // Predicated region
    $region6: #{tpu_custom_call.1} parent=1 // pred_check
      _
    $region7: #{tpu_custom_call.1} parent=1 // pred_check_branch
      %14 = sbr.rel (0) target = $region9
    $region8: #{tpu_custom_call.1} parent=1 // pred_region
      _
    $region9: #{tpu_custom_call.1} parent=1 // pred_fallthru
      _
    // Predicated region
    $region10: #{tpu_custom_call.1} parent=1 // pred_check
      _
    $region11: #{tpu_custom_call.1} parent=1 // pred_check_branch
      %16 = sbr.rel (0) target = $region13
    $region12: #{tpu_custom_call.1} parent=1 // pred_region
      _
    $region13: #{tpu_custom_call.1} parent=1 // pred_fallthru
      _
    // Predicated region
    $region14: #{tpu_custom_call.1} parent=1 // pred_check
      _
    $region15: #{tpu_custom_call.1} parent=1 // pred_check_branch
      %18 = sbr.rel (0) target = $region17
    $region16: #{tpu_custom_call.1} parent=1 // pred_region
      _
    $region17: #{tpu_custom_call.1} parent=1 // pred_fallthru
      _
    // Predicated region
    $region18: #{tpu_custom_call.1} parent=1 // pred_check
      _
    $region19: #{tpu_custom_call.1} parent=1 // pred_check_branch
      %20 = sbr.rel (0) target = $region21
    $region20: #{tpu_custom_call.1} parent=1 // pred_region
      _
    $region21: #{tpu_custom_call.1} parent=1 // pred_fallthru
      _
    %p22 = scmp.eq.s32.totalorder 0, 0
    // Predicated region
    $region22: #{tpu_custom_call.1} parent=1 // pred_check
      %p23 = pneg %p22
    $region23: #{tpu_custom_call.1} parent=1 // pred_check_branch
      %25 = sbr.rel (%p23) target = $region25
    $region24: #{tpu_custom_call.1} parent=1 // pred_region
      %26 = vst [vmem:[#allocation2] sm:$0xff] 0.0
    $region25: #{tpu_custom_call.1} parent=1 // pred_fallthru
      _
    %v27 = vld [vmem:[%s0] sm:$0xff]
    %v28 = vld [vmem:[%s0 + $0x8] sm:$0xff]
    %v29 = vld [vmem:[%s0 + $0x10] sm:$0xff]
    %v30 = vld [vmem:[%s0 + $0x18] sm:$0xff]
    %v31 = vld [vmem:[%s0 + $0x20] sm:$0xff]
    %v32 = vld [vmem:[%s0 + $0x28] sm:$0xff]
    %v33 = vld [vmem:[%s0 + $0x30] sm:$0xff]
    %v34 = vld [vmem:[%s0 + $0x38] sm:$0xff]
    %v35 = vld [vmem:[%s0 + $0x40] sm:$0xff]
    %v36 = vld [vmem:[%s0 + $0x48] sm:$0xff]
    %v37 = vld [vmem:[%s0 + $0x50] sm:$0xff]
    %v38 = vld [vmem:[%s0 + $0x58] sm:$0xff]
    %v39 = vld [vmem:[%s0 + $0x60] sm:$0xff]
    %v40 = vld [vmem:[%s0 + $0x68] sm:$0xff]
    %v41 = vld [vmem:[%s0 + $0x70] sm:$0xff]
    %v42 = vld [vmem:[%s0 + $0x78] sm:$0xff]
    %v43 = vld [vmem:[%s1] sm:$0xff]
    %v44 = vld [vmem:[%s1 + $0x8] sm:$0xff]
    %vm45 = vcmask 130048
    %v47 = vsel %vm45, %v27, 0
    %v50 = vsel %vm45, %v28, 0
    %v53 = vsel %vm45, %v29, 0
    %v56 = vsel %vm45, %v30, 0
    %v59 = vsel %vm45, %v31, 0
    %v62 = vsel %vm45, %v32, 0
    %v65 = vsel %vm45, %v33, 0
    %v68 = vsel %vm45, %v34, 0
    %v71 = vsel %vm45, %v35, 0
    %v74 = vsel %vm45, %v36, 0
    %v77 = vsel %vm45, %v37, 0
    %v80 = vsel %vm45, %v38, 0
    %v83 = vsel %vm45, %v39, 0
    %v86 = vsel %vm45, %v40, 0
    %v89 = vsel %vm45, %v41, 0
    %v92 = vsel %vm45, %v42, 0
    %94 = vmatprep.subr.mxu0 0.0
    %95 = vmatpush1.msra.mxu0 0.0
    %96 = vmatprep.subr.mxu0 0.0
    %97 = vmatpush1.msra.mxu0 0.0
    %98 = vmatprep.subr.mxu0 0.0
    %99 = vmatpush1.msra.mxu0 0.0
    %100 = vmatprep.subr.mxu0 0.0
    %101 = vmatpush1.msra.mxu0 0.0
    %102 = vmatprep.subr.mxu0 0.0
    %103 = vmatpush1.msra.mxu0 0.0
    %104 = vmatprep.subr.mxu0 0.0
    %105 = vmatpush1.msra.mxu0 0.0
    %106 = vmatprep.subr.mxu0 0.0
    %107 = vmatpush1.msra.mxu0 0.0
    %108 = vmatprep.subr.mxu0 0.0
    %109 = vmatpush1.msra.mxu0 0.0
    %110 = vmatprep.subr.mxu0 0.0
    %111 = vmatpush1.msra.mxu0 0.0
    %112 = vmatprep.subr.mxu0 0.0
    %113 = vmatpush1.msra.mxu0 0.0
    %114 = vmatprep.subr.mxu0 0.0
    %115 = vmatpush1.msra.mxu0 0.0
    %116 = vmatprep.subr.mxu0 0.0
    %117 = vmatpush1.msra.mxu0 0.0
    %118 = vmatprep.subr.mxu0 0.0
    %119 = vmatpush1.msra.mxu0 0.0
    %120 = vmatprep.subr.mxu0 0.0
    %121 = vmatpush1.msra.mxu0 0.0
    %122 = vmatprep.subr.mxu0 0.0
    %123 = vmatpush1.msra.mxu0 %v44
    %124 = vmatprep.subr.mxu0 0.0
    %125 = vmatpush1.msra.mxu0 %v43
    %126 = vmatprep.subr.mxu0 0.0
    %127 = vmatpush2.msra.mxu0 0.0
    %128 = vmatprep.subr.mxu0 0.0
    %129 = vmatpush2.msra.mxu0 0.0
    %130 = vmatprep.subr.mxu0 0.0
    %131 = vmatpush2.msra.mxu0 0.0
    %132 = vmatprep.subr.mxu0 0.0
    %133 = vmatpush2.msra.mxu0 0.0
    %134 = vmatprep.subr.mxu0 0.0
    %135 = vmatpush2.msra.mxu0 0.0
    %136 = vmatprep.subr.mxu0 0.0
    %137 = vmatpush2.msra.mxu0 0.0
    %138 = vmatprep.subr.mxu0 0.0
    %139 = vmatpush2.msra.mxu0 0.0
    %140 = vmatprep.subr.mxu0 0.0
    %141 = vmatpush2.msra.mxu0 0.0
    %142 = vmatprep.subr.mxu0 0.0
    %143 = vmatpush2.msra.mxu0 0.0
    %144 = vmatprep.subr.mxu0 0.0
    %145 = vmatpush2.msra.mxu0 0.0
    %146 = vmatprep.subr.mxu0 0.0
    %147 = vmatpush2.msra.mxu0 0.0
    %148 = vmatprep.subr.mxu0 0.0
    %149 = vmatpush2.msra.mxu0 0.0
    %150 = vmatprep.subr.mxu0 0.0
    %151 = vmatpush2.msra.mxu0 0.0
    %152 = vmatprep.subr.mxu0 0.0
    %153 = vmatpush2.msra.mxu0 0.0
    %154 = vmatprep.subr.mxu0 0.0
    %155 = vmatpush2.msra.mxu0 0.0
    %156 = vmatprep.subr.mxu0 0.0
    %157 = vmatpush2.msra.mxu0 0.0
    %158 = vmatprep.mubr.f32.mxu0 0.0
    %159 = vmatmul.mubr.f32.gmra.mxu0 %v47
    %v160 = vpop.f32.mrf.mxu0
    %v161 = vadd.f32 0.0, %v160
    %v162 = vpop.f32.mrf.mxu0
    %163 = vmatprep.mubr.f32.mxu0 0.0
    %164 = vmatmul.mubr.f32.gmra.mxu0 %v50
    %v165 = vpop.f32.mrf.mxu0
    %v166 = vadd.f32 0.0, %v165
    %v167 = vpop.f32.mrf.mxu0
    %168 = vmatprep.mubr.f32.mxu0 0.0
    %169 = vmatmul.mubr.f32.gmra.mxu0 %v53
    %v170 = vpop.f32.mrf.mxu0
    %v171 = vadd.f32 0.0, %v170
    %v172 = vpop.f32.mrf.mxu0
    %173 = vmatprep.mubr.f32.mxu0 0.0
    %174 = vmatmul.mubr.f32.gmra.mxu0 %v56
    %v175 = vpop.f32.mrf.mxu0
    %v176 = vadd.f32 0.0, %v175
    %v177 = vpop.f32.mrf.mxu0
    %178 = vmatprep.mubr.f32.mxu0 0.0
    %179 = vmatmul.mubr.f32.gmra.mxu0 %v59
    %v180 = vpop.f32.mrf.mxu0
    %v181 = vadd.f32 0.0, %v180
    %v182 = vpop.f32.mrf.mxu0
    %183 = vmatprep.mubr.f32.mxu0 0.0
    %184 = vmatmul.mubr.f32.gmra.mxu0 %v62
    %v185 = vpop.f32.mrf.mxu0
    %v186 = vadd.f32 0.0, %v185
    %v187 = vpop.f32.mrf.mxu0
    %188 = vmatprep.mubr.f32.mxu0 0.0
    %189 = vmatmul.mubr.f32.gmra.mxu0 %v65
    %v190 = vpop.f32.mrf.mxu0
    %v191 = vadd.f32 0.0, %v190
    %v192 = vpop.f32.mrf.mxu0
    %193 = vmatprep.mubr.f32.mxu0 0.0
    %194 = vmatmul.mubr.f32.gmra.mxu0 %v68
    %v195 = vpop.f32.mrf.mxu0
    %v196 = vadd.f32 0.0, %v195
    %v197 = vpop.f32.mrf.mxu0
    %198 = vmatprep.mubr.f32.mxu0 0.0
    %199 = vmatmul.mubr.f32.gmra.mxu0 %v71
    %v200 = vpop.f32.mrf.mxu0
    %v201 = vadd.f32 0.0, %v200
    %v202 = vpop.f32.mrf.mxu0
    %203 = vmatprep.mubr.f32.mxu0 0.0
    %204 = vmatmul.mubr.f32.gmra.mxu0 %v74
    %v205 = vpop.f32.mrf.mxu0
    %v206 = vadd.f32 0.0, %v205
    %v207 = vpop.f32.mrf.mxu0
    %208 = vmatprep.mubr.f32.mxu0 0.0
    %209 = vmatmul.mubr.f32.gmra.mxu0 %v77
    %v210 = vpop.f32.mrf.mxu0
    %v211 = vadd.f32 0.0, %v210
    %v212 = vpop.f32.mrf.mxu0
    %213 = vmatprep.mubr.f32.mxu0 0.0
    %214 = vmatmul.mubr.f32.gmra.mxu0 %v80
    %v215 = vpop.f32.mrf.mxu0
    %v216 = vadd.f32 0.0, %v215
    %v217 = vpop.f32.mrf.mxu0
    %218 = vmatprep.mubr.f32.mxu0 0.0
    %219 = vmatmul.mubr.f32.gmra.mxu0 %v83
    %v220 = vpop.f32.mrf.mxu0
    %v221 = vadd.f32 0.0, %v220
    %v222 = vpop.f32.mrf.mxu0
    %223 = vmatprep.mubr.f32.mxu0 0.0
    %224 = vmatmul.mubr.f32.gmra.mxu0 %v86
    %v225 = vpop.f32.mrf.mxu0
    %v226 = vadd.f32 0.0, %v225
    %v227 = vpop.f32.mrf.mxu0
    %228 = vmatprep.mubr.f32.mxu0 0.0
    %229 = vmatmul.mubr.f32.gmra.mxu0 %v89
    %v230 = vpop.f32.mrf.mxu0
    %v231 = vadd.f32 0.0, %v230
    %v232 = vpop.f32.mrf.mxu0
    %233 = vmatprep.mubr.f32.mxu0 0.0
    %234 = vmatmul.mubr.f32.gmra.mxu0 %v92
    %v235 = vpop.f32.mrf.mxu0
    %v236 = vadd.f32 0.0, %v235
    %v237 = vpop.f32.mrf.mxu0
    %238 = vdwg.mxu0
    %v239 = vld [vmem:[%s2] sm:$0xff]
    %v240 = vld [vmem:[%s2 + $0x8] sm:$0xff]
    %v241 = vld [vmem:[%s2 + $0x10] sm:$0xff]
    %v242 = vld [vmem:[%s2 + $0x18] sm:$0xff]
    %v243 = vld [vmem:[%s2 + $0x20] sm:$0xff]
    %v244 = vld [vmem:[%s2 + $0x28] sm:$0xff]
    %v245 = vld [vmem:[%s2 + $0x30] sm:$0xff]
    %v246 = vld [vmem:[%s2 + $0x38] sm:$0xff]
    %v247 = vld [vmem:[%s2 + $0x40] sm:$0xff]
    %v248 = vld [vmem:[%s2 + $0x48] sm:$0xff]
    %v249 = vld [vmem:[%s2 + $0x50] sm:$0xff]
    %v250 = vld [vmem:[%s2 + $0x58] sm:$0xff]
    %v251 = vld [vmem:[%s2 + $0x60] sm:$0xff]
    %v252 = vld [vmem:[%s2 + $0x68] sm:$0xff]
    %v253 = vld [vmem:[%s2 + $0x70] sm:$0xff]
    %v254 = vld [vmem:[%s2 + $0x78] sm:$0xff]
    %v255 = vld [vmem:[%s3] sm:$0x1]
    %257 = vset.pattern.permute.xlu0 0
    %258 = vperm.xlu0 %257, %v239
    %v259 = vpop.permute.xlu0 %258
    %262 = vset.pattern.permute.xlu0 0
    %263 = vperm.xlu0 %262, %v240
    %v264 = vpop.permute.xlu0 %263
    %267 = vset.pattern.permute.xlu0 0
    %268 = vperm.xlu0 %267, %v241
    %v269 = vpop.permute.xlu0 %268
    %272 = vset.pattern.permute.xlu0 0
    %273 = vperm.xlu0 %272, %v242
    %v274 = vpop.permute.xlu0 %273
    %277 = vset.pattern.permute.xlu0 0
    %278 = vperm.xlu0 %277, %v243
    %v279 = vpop.permute.xlu0 %278
    %282 = vset.pattern.permute.xlu0 0
    %283 = vperm.xlu0 %282, %v244
    %v284 = vpop.permute.xlu0 %283
    %287 = vset.pattern.permute.xlu0 0
    %288 = vperm.xlu0 %287, %v245
    %v289 = vpop.permute.xlu0 %288
    %292 = vset.pattern.permute.xlu0 0
    %293 = vperm.xlu0 %292, %v246
    %v294 = vpop.permute.xlu0 %293
    %297 = vset.pattern.permute.xlu0 0
    %298 = vperm.xlu0 %297, %v247
    %v299 = vpop.permute.xlu0 %298
    %302 = vset.pattern.permute.xlu0 0
    %303 = vperm.xlu0 %302, %v248
    %v304 = vpop.permute.xlu0 %303
    %307 = vset.pattern.permute.xlu0 0
    %308 = vperm.xlu0 %307, %v249
    %v309 = vpop.permute.xlu0 %308
    %312 = vset.pattern.permute.xlu0 0
    %313 = vperm.xlu0 %312, %v250
    %v314 = vpop.permute.xlu0 %313
    %317 = vset.pattern.permute.xlu0 0
    %318 = vperm.xlu0 %317, %v251
    %v319 = vpop.permute.xlu0 %318
    %322 = vset.pattern.permute.xlu0 0
    %323 = vperm.xlu0 %322, %v252
    %v324 = vpop.permute.xlu0 %323
    %327 = vset.pattern.permute.xlu0 0
    %328 = vperm.xlu0 %327, %v253
    %v329 = vpop.permute.xlu0 %328
    %332 = vset.pattern.permute.xlu0 0
    %333 = vperm.xlu0 %332, %v254
    %v334 = vpop.permute.xlu0 %333
    %v337 = vlaneseq
    %v338 = vshrl.u32 %v337, 7
    %v339 = vsub.s32 0, %v338
    %v340 = vrot.slane %v255, %v339
    %v342 = vadd.f32 %v259, %v340
    %v343 = vadd.f32 %v264, %v340
    %v344 = vadd.f32 %v269, %v340
    %v345 = vadd.f32 %v274, %v340
    %v346 = vadd.f32 %v279, %v340
    %v347 = vadd.f32 %v284, %v340
    %v348 = vadd.f32 %v289, %v340
    %v349 = vadd.f32 %v294, %v340
    %v350 = vadd.f32 %v299, %v340
    %v351 = vadd.f32 %v304, %v340
    %v352 = vadd.f32 %v309, %v340
    %v353 = vadd.f32 %v314, %v340
    %v354 = vadd.f32 %v319, %v340
    %v355 = vadd.f32 %v324, %v340
    %v356 = vadd.f32 %v329, %v340
    %v357 = vadd.f32 %v334, %v340
    %v358 = vmul.f32 %v161, 2.0
    %v359 = vmul.f32 %v166, 2.0
    %v360 = vmul.f32 %v171, 2.0
    %v361 = vmul.f32 %v176, 2.0
    %v362 = vmul.f32 %v181, 2.0
    %v363 = vmul.f32 %v186, 2.0
    %v364 = vmul.f32 %v191, 2.0
    %v365 = vmul.f32 %v196, 2.0
    %v366 = vmul.f32 %v201, 2.0
    %v367 = vmul.f32 %v206, 2.0
    %v368 = vmul.f32 %v211, 2.0
    %v369 = vmul.f32 %v216, 2.0
    %v370 = vmul.f32 %v221, 2.0
    %v371 = vmul.f32 %v226, 2.0
    %v372 = vmul.f32 %v231, 2.0
    %v373 = vmul.f32 %v236, 2.0
    %v374 = vsub.f32 %v342, %v358
    %v375 = vsub.f32 %v343, %v359
    %v376 = vsub.f32 %v344, %v360
    %v377 = vsub.f32 %v345, %v361
    %v378 = vsub.f32 %v346, %v362
    %v379 = vsub.f32 %v347, %v363
    %v380 = vsub.f32 %v348, %v364
    %v381 = vsub.f32 %v349, %v365
    %v382 = vsub.f32 %v350, %v366
    %v383 = vsub.f32 %v351, %v367
    %v384 = vsub.f32 %v352, %v368
    %v385 = vsub.f32 %v353, %v369
    %v386 = vsub.f32 %v354, %v370
    %v387 = vsub.f32 %v355, %v371
    %v388 = vsub.f32 %v356, %v372
    %v389 = vsub.f32 %v357, %v373
    %v390 = vmax.f32 %v374, 0.0
    %v391 = vmax.f32 %v375, 0.0
    %v392 = vmax.f32 %v376, 0.0
    %v393 = vmax.f32 %v377, 0.0
    %v394 = vmax.f32 %v378, 0.0
    %v395 = vmax.f32 %v379, 0.0
    %v396 = vmax.f32 %v380, 0.0
    %v397 = vmax.f32 %v381, 0.0
    %v398 = vmax.f32 %v382, 0.0
    %v399 = vmax.f32 %v383, 0.0
    %v400 = vmax.f32 %v384, 0.0
    %v401 = vmax.f32 %v385, 0.0
    %v402 = vmax.f32 %v386, 0.0
    %v403 = vmax.f32 %v387, 0.0
    %v404 = vmax.f32 %v388, 0.0
    %v405 = vmax.f32 %v389, 0.0
    %v406 = vmul.f32 %v390, -0.02
    %v407 = vmul.f32 %v391, -0.02
    %v408 = vmul.f32 %v392, -0.02
    %v409 = vmul.f32 %v393, -0.02
    %v410 = vmul.f32 %v394, -0.02
    %v411 = vmul.f32 %v395, -0.02
    %v412 = vmul.f32 %v396, -0.02
    %v413 = vmul.f32 %v397, -0.02
    %v414 = vmul.f32 %v398, -0.02
    %v415 = vmul.f32 %v399, -0.02
    %v416 = vmul.f32 %v400, -0.02
    %v417 = vmul.f32 %v401, -0.02
    %v418 = vmul.f32 %v402, -0.02
    %v419 = vmul.f32 %v403, -0.02
    %v420 = vmul.f32 %v404, -0.02
    %v421 = vmul.f32 %v405, -0.02
    %v422 = vmul.f32 %v406, 1.442695
    %v423 = vpow.pop %v422
    %v424 = vmul.f32 %v407, 1.442695
    %v425 = vpow.pop %v424
    %v426 = vmul.f32 %v408, 1.442695
    %v427 = vpow.pop %v426
    %v428 = vmul.f32 %v409, 1.442695
    %v429 = vpow.pop %v428
    %v430 = vmul.f32 %v410, 1.442695
    %v431 = vpow.pop %v430
    %v432 = vmul.f32 %v411, 1.442695
    %v433 = vpow.pop %v432
    %v434 = vmul.f32 %v412, 1.442695
    %v435 = vpow.pop %v434
    %v436 = vmul.f32 %v413, 1.442695
    %v437 = vpow.pop %v436
    %v438 = vmul.f32 %v414, 1.442695
    %v439 = vpow.pop %v438
    %v440 = vmul.f32 %v415, 1.442695
    %v441 = vpow.pop %v440
    %v442 = vmul.f32 %v416, 1.442695
    %v443 = vpow.pop %v442
    %v444 = vmul.f32 %v417, 1.442695
    %v445 = vpow.pop %v444
    %v446 = vmul.f32 %v418, 1.442695
    %v447 = vpow.pop %v446
    %v448 = vmul.f32 %v419, 1.442695
    %v449 = vpow.pop %v448
    %v450 = vmul.f32 %v420, 1.442695
    %v451 = vpow.pop %v450
    %v452 = vmul.f32 %v421, 1.442695
    %v453 = vpow.pop %v452
    %v454 = vld [vmem:[#allocation2] sm:$0xff]
    %v455 = vld [vmem:[%s4] sm:$0xf]
    %v456 = vpack.c.bf16 %v425, %v423
    %v457 = vpack.c.bf16 %v429, %v427
    %v458 = vpack.c.bf16 %v433, %v431
    %v459 = vpack.c.bf16 %v437, %v435
    %v460 = vpack.c.bf16 %v441, %v439
    %v461 = vpack.c.bf16 %v445, %v443
    %v462 = vpack.c.bf16 %v449, %v447
    %v463 = vpack.c.bf16 %v453, %v451
    %464 = vmatprep.subr.bf16.mxu0 0
    %465 = vmatpush1.bf16.msra.mxu0 %v463
    %466 = vmatprep.subr.bf16.mxu0 0
    %467 = vmatpush1.bf16.msra.mxu0 %v462
    %468 = vmatprep.subr.bf16.mxu0 0
    %469 = vmatpush1.bf16.msra.mxu0 %v461
    %470 = vmatprep.subr.bf16.mxu0 0
    %471 = vmatpush1.bf16.msra.mxu0 %v460
    %472 = vmatprep.subr.bf16.mxu0 0
    %473 = vmatpush1.bf16.msra.mxu0 %v459
    %474 = vmatprep.subr.bf16.mxu0 0
    %475 = vmatpush1.bf16.msra.mxu0 %v458
    %476 = vmatprep.subr.bf16.mxu0 0
    %477 = vmatpush1.bf16.msra.mxu0 %v457
    %478 = vmatprep.subr.bf16.mxu0 0
    %479 = vmatpush1.bf16.msra.mxu0 %v456
    %480 = vmatprep.subr.bf16.mxu0 0
    %481 = vmatpush2.bf16.msra.mxu0 0
    %482 = vmatprep.subr.bf16.mxu0 0
    %483 = vmatpush2.bf16.msra.mxu0 0
    %484 = vmatprep.subr.bf16.mxu0 0
    %485 = vmatpush2.bf16.msra.mxu0 0
    %486 = vmatprep.subr.bf16.mxu0 0
    %487 = vmatpush2.bf16.msra.mxu0 0
    %488 = vmatprep.subr.bf16.mxu0 0
    %489 = vmatpush2.bf16.msra.mxu0 0
    %490 = vmatprep.subr.bf16.mxu0 0
    %491 = vmatpush2.bf16.msra.mxu0 0
    %492 = vmatprep.subr.bf16.mxu0 0
    %493 = vmatpush2.bf16.msra.mxu0 0
    %494 = vmatprep.subr.bf16.mxu0 0
    %495 = vmatpush2.bf16.msra.mxu0 0
    %496 = vmatprep.mubr.bf16.mxu0 0
    %497 = vmatmul.mubr.bf16.gmra.mxu0 %v455
    %v498 = vpop.f32.mrf.mxu0
    %v499 = vadd.f32 0.0, %v498
    %v500 = vpop.f32.mrf.mxu0
    %v501 = vpop.f32.mrf.mxu0
    %v502 = vpop.f32.mrf.mxu0
    %503 = vdwg.mxu0
    %v504 = vadd.f32 %v454, %v499
    %505 = vst [vmem:[#allocation2] sm:$0xff] %v504
    // Predicated region
    $region26: #{tpu_custom_call.1} parent=1 // pred_check
      _
    $region27: #{tpu_custom_call.1} parent=1 // pred_check_branch
      %507 = sbr.rel (0) target = $region29
    $region28: #{tpu_custom_call.1} parent=1 // pred_region
      %s509 = ssub.s32 128, 128
      %510 = vsyncadd [#allocation3], %s509
      %s512 = sshll.u32 [#allocation2], 4
      %s513 = int_to_ptr.vmem [resolvable:$true] %s512
      %515 = dma.vmem_to_hbm [thread:$0]  %s513, 128, %s5, [#allocation3]
    $region29: #{tpu_custom_call.1} parent=1 // pred_fallthru
      _
    // Predicated region
    $region30: #{tpu_custom_call.1} parent=1 // pred_check
      _
    $region31: #{tpu_custom_call.1} parent=1 // pred_check_branch
      %517 = sbr.rel (0) target = $region33
    $region32: #{tpu_custom_call.1} parent=1 // pred_region
      %518 = dma.done [#allocation3], 128
    $region33: #{tpu_custom_call.1} parent=1 // pred_fallthru
      _
    %519 = vsyncpa [#allocation3], 1

</llo_original>
